<compile_context>
chip_gen: v5e
topology: v5e:2x2
jax: 0.10.0
libtpu: 0.0.40
codegen_flags: <defaults>
</compile_context>

<pallas_src>
import numpy as np
import jax
import jax.numpy as jnp
from jax.experimental import pallas as pl
from jax.experimental.pallas import tpu as pltpu


def make_sinusoid_table(n_position: int, d_hid: int) -> jnp.ndarray:
    """Deterministic sinusoid position encoding table, shape (1, n_position, d_hid)."""
    pos = np.arange(n_position, dtype=np.float64)[:, None]               # (P, 1)
    hid = np.arange(d_hid, dtype=np.int64)[None, :]                      # (1, D)
    angle = pos / np.power(10000.0, 2.0 * (hid // 2) / float(d_hid))     # (P, D)
    table = np.empty((n_position, d_hid), dtype=np.float64)
    table[:, 0::2] = np.sin(angle[:, 0::2])
    table[:, 1::2] = np.cos(angle[:, 1::2])
    return jnp.asarray(table[None, :, :], dtype=jnp.float32)             # (1, P, D)


def _add_pos_kernel(x_ref, pos_ref, o_ref):
    # x_ref: (B, tF), pos_ref: (1, tF) f32 -> broadcast add over batch
    # (sublane broadcast). Accumulate in f32, cast back on store.
    o_ref[...] = (x_ref[...].astype(jnp.float32) + pos_ref[...]).astype(o_ref.dtype)


def _round_up(v: int, m: int) -> int:
    return ((v + m - 1) // m) * m


def _vmem_budget_bytes() -> int:
    """Generation-aware budget for the double-buffered working set."""
    try:
        kind = jax.devices()[0].device_kind.lower()
    except Exception:
        kind = ""
    if "v7" in kind:
        return 24 * 1024 * 1024   # 64 MiB physical VMEM on v7x: keep headroom
    return 32 * 1024 * 1024       # v5e / v6e: 128 MiB physical VMEM


def _pick_feature_tile(F: int, B: int, x_itemsize: int, vmem_budget_bytes: int) -> int:
    """Largest multiple-of-128 feature tile whose *padded*, double-buffered
    working set fits the budget.

    Accounting includes (8,128) sublane padding:
      - x / out blocks of (B, tF) occupy ceil(B/8)*8 sublanes each,
      - the (1, tF) f32 pos block pads to 8 sublanes,
      - the pipeline double-buffers every operand.
    """
    b_pad = _round_up(max(B, 1), 8)
    per_lane = 2 * (2 * b_pad * x_itemsize + 8 * 4)   # 2 bufs * (x + out + pos)
    max_tf = max(128, (vmem_budget_bytes // per_lane) // 128 * 128)
    tf = min(max_tf, _round_up(F, 128))
    # Keep >= 2 grid steps so v7x's second TensorCore gets work ("parallel"
    # axis); only when each half still has >= 128 lanes. Near-free on 1-TC
    # chips (one extra ~0.35 us grid step).
    if tf >= F and F >= 256:
        tf = _round_up(pl.cdiv(F, 2), 128)
    return tf


def positional_encoding_forward(x: jnp.ndarray, pos_table: jnp.ndarray) -> jnp.ndarray:
    """x: (B, S, D); pos_table: (1, n_position, D) f32. Returns x + pos_table[:, :S]."""
    B, S, D = x.shape
    _, P, Dp = pos_table.shape
    assert Dp == D, f"hidden dim mismatch: x has {D}, pos_table has {Dp}"
    assert S <= P, f"sequence length {S} exceeds n_position {P}"

    dtype = x.dtype
    itemsize = jnp.dtype(dtype).itemsize
    F = S * D

    # Lane-dense layout: collapse (S, D) -> F (reshape of contiguous data).
    x2 = x.reshape(B, F)
    # Full flattened table, kept in f32 (no per-call cast for low-precision x);
    # the BlockSpec index_map only ever touches its first S*D elements.
    pos2 = pos_table.reshape(1, P * D).astype(jnp.float32)

    tF = _pick_feature_tile(F, B, itemsize, _vmem_budget_bytes())
    n_tiles = pl.cdiv(F, tF)

    # Explicit VMEM limit: padded double-buffered working set + headroom,
    # floored at 32 MiB (raises v5e's 16 MiB scoped default), capped well
    # under v7x's 64 MiB physical VMEM.
    b_pad = _round_up(B, 8)
    working_set = 2 * (2 * b_pad * itemsize + 8 * 4) * tF
    vmem_limit = int(min(max(2 * working_set, 32 * 1024 * 1024), 48 * 1024 * 1024))

    cost = pl.CostEstimate(
        flops=B * F,
        transcendentals=0,
        bytes_accessed=2 * B * F * itemsize + F * 4,
    )

    out2 = pl.pallas_call(
        _add_pos_kernel,
        out_shape=jax.ShapeDtypeStruct((B, F), dtype),
        grid_spec=pl.GridSpec(
            grid=(n_tiles,),
            in_specs=[
                pl.BlockSpec((B, tF), lambda f: (0, f)),   # x tile: full batch per tile
                pl.BlockSpec((1, tF), lambda f: (0, f)),   # pos tile: fetched once/tile
            ],
            out_specs=pl.BlockSpec((B, tF), lambda f: (0, f)),
        ),
        compiler_params=pltpu.CompilerParams(
            dimension_semantics=("parallel",),
            vmem_limit_bytes=vmem_limit,
        ),
        input_output_aliases={0: 0},   # x is dead after the add: write in place
        cost_estimate=cost,
    )(x2, pos2)

    return out2.reshape(B, S, D)


if __name__ == "__main__":
    # Small shapes consistent with the module: batch=2, seq=8, hidden=32, n_position=16.
    B, S, D = 2, 8, 32
    n_position = 16

    key = jax.random.PRNGKey(0)
    x = jax.random.normal(key, (B, S, D), dtype=jnp.float32)

    pos_table = make_sinusoid_table(n_position, D)

    # Reference computed BEFORE the kernel call (the kernel donates the
    # flattened x buffer via input_output_aliases).
    ref = np.asarray(x + pos_table[:, :S, :])

    out = positional_encoding_forward(x, pos_table)
    out = jax.block_until_ready(out)

    np.testing.assert_allclose(np.asarray(out), ref, rtol=1e-6, atol=1e-6)

    print("KERNEL_OK")
</pallas_src>

<mosaic_0001>
module attributes {stable_mosaic.version = 11 : i64} {
  func.func @_add_pos_kernel(%arg0: i32, %arg1: memref<2x128xf32, #tpu.memory_space<vmem>>, %arg2: memref<1x128xf32, #tpu.memory_space<vmem>>, %arg3: memref<2x128xf32, #tpu.memory_space<vmem>>) attributes {dimension_semantics = [#tpu.dimension_semantics<parallel>], iteration_bounds = array<i64: 2>, scalar_prefetch = 0 : i64, scratch_operands = 0 : i64, tpu.core_type = #tpu.core_type<tc>, window_params = [{transform_indices = @transform_0, window_bounds = array<i64: 2, 128>}, {transform_indices = @transform_1, window_bounds = array<i64: 1, 128>}, {transform_indices = @transform_2, window_bounds = array<i64: 2, 128>}]} {
    %c0 = arith.constant 0 : index
    %c0_0 = arith.constant 0 : index
    %0 = vector.load %arg1[%c0, %c0_0] : memref<2x128xf32, #tpu.memory_space<vmem>>, vector<2x128xf32>
    %c0_1 = arith.constant 0 : index
    %c0_2 = arith.constant 0 : index
    %1 = vector.load %arg2[%c0_1, %c0_2] : memref<1x128xf32, #tpu.memory_space<vmem>>, vector<1x128xf32>
    %2 = vector.broadcast %1 : vector<1x128xf32> to vector<2x128xf32>
    %3 = arith.addf %0, %2 : vector<2x128xf32>
    %c0_3 = arith.constant 0 : index
    %c0_4 = arith.constant 0 : index
    %4 = vector.load %arg3[%c0_3, %c0_4] : memref<2x128xf32, #tpu.memory_space<vmem>>, vector<2x128xf32>
    tpu.vector_store %arg3[%c0_3, %c0_4], %3 {strides = array<i32>} : memref<2x128xf32, #tpu.memory_space<vmem>>, vector<2x128xf32>,
    return
  }
  func.func @transform_0(%arg0: i32) -> (i32, i32) {
    %c0_i32 = arith.constant 0 : i32
    %c0_i32_0 = arith.constant 0 : i32
    return %c0_i32, %arg0 : i32, i32
  }
  func.func @transform_1(%arg0: i32) -> (i32, i32) {
    %c0_i32 = arith.constant 0 : i32
    %c0_i32_0 = arith.constant 0 : i32
    return %c0_i32, %arg0 : i32, i32
  }
  func.func @transform_2(%arg0: i32) -> (i32, i32) {
    %c0_i32 = arith.constant 0 : i32
    %c0_i32_0 = arith.constant 0 : i32
    return %c0_i32, %arg0 : i32, i32
  }
}

</mosaic_0001>

<llo_original>
// kernel: tpu_custom_call.1
$region0: #{tpu_custom_call.1}
  #allocation0 [shape = 'u32[]', space=smem, size = 0x4, offset = 0x4, fixed_abs, tag = 'smem constant byte address 0x4 - core index']
  #allocation1 [shape = 'u32[72,128]{1,0:T(1,128)}', space=vmem, size = 0x9000, scoped, tag = 'internal scratch']
  %s0 = inlined_call_operand.hbm [shape: f32[2,256], index: 0, kind: input, shape index: {}, may-alias: {0,2}]
  %s1 = inlined_call_operand.vmem [shape: f32[1,512], index: 1, kind: input, shape index: {}]
  %s2 = inlined_call_operand.hbm [shape: f32[2,256], index: 2, kind: output, shape index: {}, may-alias: {0,2}]
  %s3 = sld [smem:[#allocation0]]
  $region45: #{tpu_custom_call.1} parent=0
    _
  %s5 = ssub.s32 1, %s3
  %s6 = scalar_select 0, %s5, %s3
  $region1: #{tpu_custom_call.1} parent=0
    #allocation2 [shape = 'u8[2048]{0}', space=vmem, size = 0x800, scoped, tag = 'input window, operand 0']
    #allocation3 [shape = 's32[2]{0}', space=sflag, size = 0x8, scoped, tag = 'scoped memory for tpu_custom_call.1']
    #allocation4 [shape = 's32[2]{0}', space=sflag, size = 0x8, scoped, tag = 'scoped memory for tpu_custom_call.1']
    #allocation5 [shape = 'u8[2048]{0}', space=vmem, size = 0x800, scoped, tag = 'output window, operand 0']
    %7 = vsyncpa [#allocation3], 0
    %s8 = scalar_lea.sflag [#allocation3], 1
    %9 = vsyncpa %s8, 0
    %10 = vsyncpa [#allocation4], 0
    %s11 = scalar_lea.sflag [#allocation4], 1
    %12 = vsyncpa %s11, 0
    loop: start=0, step=1, limit=4
    $region2: #{tpu_custom_call.1} parent=1 // loop_pre_header
      _
    $region3: #{tpu_custom_call.1} parent=1 // loop_header
      %s14 = sphi 0, %s18
      %p15 = scmp.ge.s32.totalorder %s14, 4
      %s24 = sphi 0, %s26
      %s27 = sphi 0, %s24
      %s28 = sphi 0, %s27
      %s44 = sphi 0, %s28
      %s50 = sphi 0, %s52
      %s53 = sphi 0, %s50
      %s54 = sphi 0, %s53
      %s70 = sphi 0, %s54
      %s76 = sphi 0, %s78
      %s79 = sphi 0, %s76
      %s80 = sphi 0, %s79
      %s96 = sphi 0, %s80
    $region4: #{tpu_custom_call.1} parent=1 // loop_header_branch
      %17 = sbr.rel (%p15) target = $region8
    $region5: #{tpu_custom_call.1} parent=1 // loop_body
      %s19 = ssub.s32 %s14, 1
      %s20 = ssub.s32 %s14, 2
      %s21 = sadd.s32 %s14, 1
      %s22 = ssub.s32 %s14, %s21
      %p23 = scmp.eq.s32.totalorder %s22, 0
      %s25 = sadd.s32 %s24, 1
      %s26 = scalar_select %p23, %s24, %s25
      %p29 = pneg %p23
      %p30 = scmp.eq.s32.totalorder %s14, 1
      %p31 = por %p29, %p30
      %p32 = scmp.ne.s32.totalorder %s24, %s27
      %p33 = scmp.eq.s32.totalorder %s14, 0
      %p34 = por %p32, %p33
      %p35 = scmp.ne.s32.totalorder %s24, %s27
      %p36 = scmp.eq.s32.totalorder %s19, 1
      %p37 = por %p35, %p36
      %p38 = scmp.ne.s32.totalorder %s27, %s28
      %p39 = scmp.eq.s32.totalorder %s19, 0
      %p40 = por %p38, %p39
      %p41 = scmp.ne.s32.totalorder %s27, %s28
      %p42 = scmp.eq.s32.totalorder %s20, 1
      %p43 = por %p41, %p42
      %p45 = scmp.ne.s32.totalorder %s28, %s44
      %p46 = scmp.eq.s32.totalorder %s20, 0
      %p47 = por %p45, %p46
      %s48 = ssub.s32 %s14, %s21
      %p49 = scmp.eq.s32.totalorder %s48, 0
      %s51 = sadd.s32 %s50, 1
      %s52 = scalar_select %p49, %s50, %s51
      %p55 = pneg %p49
      %p56 = scmp.eq.s32.totalorder %s14, 1
      %p57 = por %p55, %p56
      %p58 = scmp.ne.s32.totalorder %s50, %s53
      %p59 = scmp.eq.s32.totalorder %s14, 0
      %p60 = por %p58, %p59
      %p61 = scmp.ne.s32.totalorder %s50, %s53
      %p62 = scmp.eq.s32.totalorder %s19, 1
      %p63 = por %p61, %p62
      %p64 = scmp.ne.s32.totalorder %s53, %s54
      %p65 = scmp.eq.s32.totalorder %s19, 0
      %p66 = por %p64, %p65
      %p67 = scmp.ne.s32.totalorder %s53, %s54
      %p68 = scmp.eq.s32.totalorder %s20, 1
      %p69 = por %p67, %p68
      %p71 = scmp.ne.s32.totalorder %s54, %s70
      %p72 = scmp.eq.s32.totalorder %s20, 0
      %p73 = por %p71, %p72
      %s74 = ssub.s32 %s14, %s21
      %p75 = scmp.eq.s32.totalorder %s74, 0
      %s77 = sadd.s32 %s76, 1
      %s78 = scalar_select %p75, %s76, %s77
      %p81 = pneg %p75
      %p82 = scmp.eq.s32.totalorder %s14, 1
      %p83 = por %p81, %p82
      %p84 = scmp.ne.s32.totalorder %s76, %s79
      %p85 = scmp.eq.s32.totalorder %s14, 0
      %p86 = por %p84, %p85
      %p87 = scmp.ne.s32.totalorder %s76, %s79
      %p88 = scmp.eq.s32.totalorder %s19, 1
      %p89 = por %p87, %p88
      %p90 = scmp.ne.s32.totalorder %s79, %s80
      %p91 = scmp.eq.s32.totalorder %s19, 0
      %p92 = por %p90, %p91
      %p93 = scmp.ne.s32.totalorder %s79, %s80
      %p94 = scmp.eq.s32.totalorder %s20, 1
      %p95 = por %p93, %p94
      %p97 = scmp.ne.s32.totalorder %s80, %s96
      %p98 = scmp.eq.s32.totalorder %s20, 0
      %p99 = por %p97, %p98
      %p100 = scmp.le.s32.totalorder 1, %s14
      %p101 = scmp.lt.s32.totalorder %s14, 3
      %p102 = pnand %p100, %p101
      %p103 = pneg %p102
      // Predicated region
      $region9: #{tpu_custom_call.1} parent=5 // pred_check
        _
      $region10: #{tpu_custom_call.1} parent=5 // pred_check_branch
        %105 = sbr.rel (%p102) target = $region12
      $region11: #{tpu_custom_call.1} parent=5 // pred_region
        %s106 = ssub.s32 %s14, 1
      $region12: #{tpu_custom_call.1} parent=5 // pred_fallthru
        _
      %p107 = scmp.lt.s32.totalorder %s14, 2
      // Predicated region
      $region13: #{tpu_custom_call.1} parent=5 // pred_check
        %p108 = pneg %p107
      $region14: #{tpu_custom_call.1} parent=5 // pred_check_branch
        %110 = sbr.rel (%p108) target = $region16
      $region15: #{tpu_custom_call.1} parent=5 // pred_region
        // Predicated region
        $region17: #{tpu_custom_call.1} parent=15 // pred_check
          %p111 = pneg %p34
        $region18: #{tpu_custom_call.1} parent=15 // pred_check_branch
          %113 = sbr.rel (%p111) target = $region20
        $region19: #{tpu_custom_call.1} parent=15 // pred_region
          %s114 = sand.u32 %s24, 1
          %s115 = scalar_lea.sflag [#allocation3], %s114
          %s116 = sand.u32 %s24, 1
          %s117 = smul.addr %s116, 2
          %s118 = scalar_lea.vmem [#allocation2], %s117
          %120 = vsyncadd %s115, 0
          %s121 = smul.addr %s14, 2
          %s122 = scalar_lea.hbm %s0, %s121
          %s124 = sshll.u32 %s122, 4
          %s125 = int_to_ptr.hbm [resolvable:$true] %s124
          %s126 = sshll.u32 %s118, 4
          %s127 = int_to_ptr.vmem [resolvable:$true] %s126
          %129 = dma.hbm_to_vmem [thread:$0]  %s125, 32, %s127, %s115
        $region20: #{tpu_custom_call.1} parent=15 // pred_fallthru
          _
        // Predicated region
        $region21: #{tpu_custom_call.1} parent=15 // pred_check
          %p130 = pneg %p60
        $region22: #{tpu_custom_call.1} parent=15 // pred_check_branch
          %132 = sbr.rel (%p130) target = $region24
        $region23: #{tpu_custom_call.1} parent=15 // pred_region
          %p133 = scmp.lt.s32.totalorder %s14, 3
          %s134 = scalar_select %p133, %s14, 3
          %s135 = scalar_lea.vmem %s1, %s134
        $region24: #{tpu_custom_call.1} parent=15 // pred_fallthru
          _
      $region16: #{tpu_custom_call.1} parent=5 // pred_fallthru
        _
      %p136 = scmp.le.s32.totalorder 1, %s14
      %p137 = scmp.lt.s32.totalorder %s14, 3
      %p138 = pnand %p136, %p137
      %p139 = pneg %p138
      // Predicated region
      $region25: #{tpu_custom_call.1} parent=5 // pred_check
        _
      $region26: #{tpu_custom_call.1} parent=5 // pred_check_branch
        %141 = sbr.rel (%p138) target = $region28
      $region27: #{tpu_custom_call.1} parent=5 // pred_region
        %s142 = ssub.s32 %s14, 1
        %s143 = sand.u32 %s27, 1
        %s144 = scalar_lea.sflag [#allocation3], %s143
        %s145 = sand.u32 %s27, 1
        %s146 = smul.addr %s145, 2
        %s147 = scalar_lea.vmem [#allocation2], %s146
        // Predicated region
        $region29: #{tpu_custom_call.1} parent=27 // pred_check
          %p148 = pneg %p40
        $region30: #{tpu_custom_call.1} parent=27 // pred_check_branch
          %150 = sbr.rel (%p148) target = $region32
        $region31: #{tpu_custom_call.1} parent=27 // pred_region
          %152 = dma.done %s144, 32
        $region32: #{tpu_custom_call.1} parent=27 // pred_fallthru
          _
        %s153 = sand.u32 %s27, 1
        %s154 = scalar_lea.sflag [#allocation3], %s153
        %s155 = sand.u32 %s27, 1
        %s156 = smul.addr %s155, 2
        %s157 = scalar_lea.vmem [#allocation2], %s156
        %p158 = pneg %p40
        %p159 = pneg %p37
        %p160 = scmp.lt.s32.totalorder %s19, 3
        %s161 = scalar_select %p160, %s19, 3
        %s162 = scalar_lea.vmem %s1, %s161
        %p163 = pneg %p66
        %p164 = pneg %p63
        %p165 = pneg %p92
        %p166 = pneg %p89
        %s167 = sand.u32 %s79, 1
        %s168 = scalar_lea.sflag [#allocation4], %s167
        %s169 = sand.u32 %s79, 1
        %s170 = smul.addr %s169, 2
        %s171 = scalar_lea.vmem [#allocation5], %s170
        %p172 = scmp.lt.s32.totalorder %s19, 3
        %s173 = scalar_select %p172, %s19, 3
        %s174 = scalar_lea.vmem %s1, %s173
        %v175 = vld [vmem:[%s147] sm:$0x3]
        %v176 = vld [vmem:[%s174] sm:$0x1]
        %v178 = vperm.slane %v176, 0
        %v180 = vadd.f32 %v175, %v178
        %181 = vst [vmem:[%s171] sm:$0x3] %v180
        %s182 = sand.u32 %s79, 1
        %s183 = scalar_lea.sflag [#allocation4], %s182
        %s184 = sand.u32 %s79, 1
        %s185 = smul.addr %s184, 2
        %s186 = scalar_lea.vmem [#allocation5], %s185
        // Predicated region
        $region33: #{tpu_custom_call.1} parent=27 // pred_check
          %p187 = pneg %p89
        $region34: #{tpu_custom_call.1} parent=27 // pred_check_branch
          %189 = sbr.rel (%p187) target = $region36
        $region35: #{tpu_custom_call.1} parent=27 // pred_region
          %191 = vsyncadd %s183, 0
          %s192 = smul.addr %s19, 2
          %s193 = scalar_lea.hbm %s2, %s192
          %s195 = sshll.u32 %s186, 4
          %s196 = int_to_ptr.vmem [resolvable:$true] %s195
          %s197 = sshll.u32 %s193, 4
          %s198 = int_to_ptr.hbm [resolvable:$true] %s197
          %200 = dma.vmem_to_hbm [thread:$0]  %s196, 32, %s198, %s183
        $region36: #{tpu_custom_call.1} parent=27 // pred_fallthru
          _
      $region28: #{tpu_custom_call.1} parent=5 // pred_fallthru
        _
      %p201 = scmp.le.s32.totalorder 2, %s14
      // Predicated region
      $region37: #{tpu_custom_call.1} parent=5 // pred_check
        %p202 = pneg %p201
      $region38: #{tpu_custom_call.1} parent=5 // pred_check_branch
        %204 = sbr.rel (%p202) target = $region40
      $region39: #{tpu_custom_call.1} parent=5 // pred_region
        %s205 = ssub.s32 %s14, 2
        // Predicated region
        $region41: #{tpu_custom_call.1} parent=39 // pred_check
          %p206 = pneg %p95
        $region42: #{tpu_custom_call.1} parent=39 // pred_check_branch
          %208 = sbr.rel (%p206) target = $region44
        $region43: #{tpu_custom_call.1} parent=39 // pred_region
          %s209 = sand.u32 %s80, 1
          %s210 = scalar_lea.sflag [#allocation4], %s209
          %s211 = sand.u32 %s80, 1
          %s212 = smul.addr %s211, 2
          %s213 = scalar_lea.vmem [#allocation5], %s212
          %215 = dma.done %s210, 32
        $region44: #{tpu_custom_call.1} parent=39 // pred_fallthru
          _
      $region40: #{tpu_custom_call.1} parent=5 // pred_fallthru
        _
    $region6: #{tpu_custom_call.1} parent=1 // loop_footer
      %s18 = sadd.s32 1, %s14
    $region7: #{tpu_custom_call.1} parent=1 // loop_footer_branch
      %13 = sbr.rel target = $region3
    $region8: #{tpu_custom_call.1} parent=1 // loop_exit
      _
    %216 = vsyncpa [#allocation3], 1
    %s217 = scalar_lea.sflag [#allocation3], 1
    %218 = vsyncpa %s217, 1
    %219 = vsyncpa [#allocation4], 1
    %s220 = scalar_lea.sflag [#allocation4], 1
    %221 = vsyncpa %s220, 1

</llo_original>
